<compile_context>
chip_gen: v7x
topology: tpu7x:2x2x1
jax: 0.10.0
libtpu: 0.0.40
codegen_flags: <defaults>
</compile_context>

<pallas_src>
import functools

import jax
import jax.numpy as jnp
from jax import lax
from jax.experimental import pallas as pl
from jax.experimental.pallas import tpu as pltpu


def _gamma(H, W, drop_prob, block_size, gamma_scale):
    total_size = W * H
    cbs = min(block_size, min(W, H))
    # NOTE: like timm, the denominator is unguarded for block_size > H or W.
    return (
        gamma_scale * drop_prob * total_size / (cbs ** 2)
        / ((W - block_size + 1) * (H - block_size + 1))
    )


def _maxpool_1d(a, axis, cbs, pad, size):
    """Stride-1 max-pool with zero padding along one axis via shifted maxima."""
    if cbs <= 1:
        return a
    pad_shape = list(a.shape)
    pad_shape[axis] = pad
    z = jnp.zeros(pad_shape, a.dtype)
    ap = jnp.concatenate([z, a, z], axis=axis)
    out = lax.slice_in_dim(ap, 0, size, axis=axis)
    for k in range(1, cbs):  # static unroll, cbs is small (<= 7 typically)
        out = jnp.maximum(out, lax.slice_in_dim(ap, k, k + size, axis=axis))
    return out


def _drop_block_tile_kernel(seed_ref, x_ref, xk_ref, psum_ref, *, cbs, pad):
    """One (TBC, H, W) tile: keep = 1 - maxpool(seeds); xk = x*keep; psum = sum(keep)."""
    TBC, H, W = seed_ref.shape
    s = seed_ref[...].astype(jnp.float32)                  # 0/1 seed mask

    # Separable max-pool: H (sublane axis) then W (lane axis).
    pooled = _maxpool_1d(s, axis=1, cbs=cbs, pad=pad, size=H)
    pooled = _maxpool_1d(pooled, axis=2, cbs=cbs, pad=pad, size=W)
    keep = 1.0 - pooled                                    # (TBC, H, W), {0, 1}

    # Unscaled output; the global scale is applied in pass 2.
    xk_ref[...] = (x_ref[...].astype(jnp.float32) * keep).astype(xk_ref.dtype)

    # Per-tile partial keep-count, broadcast across a lane-dense (1,1,128) block.
    tile_sum = jnp.sum(keep)
    psum_ref[...] = jnp.broadcast_to(tile_sum, psum_ref.shape).astype(jnp.float32)


def _choose_tile_bc(BC, H, W, *, target_bytes=1 << 20):
    """Tile count along B*C so one f32 x-tile (incl. (8,128) padding) ~ target_bytes."""
    padded_h = -(-H // 8) * 8
    padded_w = -(-W // 128) * 128
    per_image = padded_h * padded_w * 4
    # TODO(synk): images larger than ~target_bytes each would need H tiling
    #             with a pad-wide halo; backbone feature maps never hit this.
    return int(max(1, min(BC, target_bytes // max(per_image, 1))))


def drop_block_fast_2d_pallas(x, key, drop_prob=0.1, block_size=7, gamma_scale=1.0):
    B, C, H, W = x.shape
    cbs = min(block_size, min(W, H))
    assert cbs % 2 == 1, (
        "clipped block size must be odd (even sizes break the torch fast-path shapes)")
    gamma = _gamma(H, W, drop_prob, block_size, gamma_scale)
    pad = cbs // 2

    BC = B * C
    x3 = x.reshape(BC, H, W)

    # Bernoulli(gamma) seed mask, bf16 to halve HBM traffic into the kernel.
    seeds = jax.random.bernoulli(key, p=gamma, shape=(BC, H, W)).astype(jnp.bfloat16)

    # --- tile the B*C axis; pad so the grid divides it evenly -----------------
    tbc = _choose_tile_bc(BC, H, W)
    grid_n = -(-BC // tbc)
    bc_pad = grid_n * tbc
    if bc_pad != BC:
        # Padded images get seeds == 1 -> keep == 0 -> they contribute nothing
        # to the keep-count partial sums or the output (sliced off below).
        seeds = jnp.pad(seeds, ((0, bc_pad - BC), (0, 0), (0, 0)), constant_values=1)
        x3 = jnp.pad(x3, ((0, bc_pad - BC), (0, 0), (0, 0)))

    kernel = functools.partial(_drop_block_tile_kernel, cbs=int(cbs), pad=int(pad))

    xk, psum = pl.pallas_call(
        kernel,
        grid=(grid_n,),
        in_specs=[
            pl.BlockSpec((tbc, H, W), lambda i: (i, 0, 0)),   # seeds
            pl.BlockSpec((tbc, H, W), lambda i: (i, 0, 0)),   # x
        ],
        out_specs=[
            pl.BlockSpec((tbc, H, W), lambda i: (i, 0, 0)),   # x * keep (unscaled)
            pl.BlockSpec((1, 1, 128), lambda i: (i, 0, 0)),   # per-tile keep count
        ],
        out_shape=[
            jax.ShapeDtypeStruct((bc_pad, H, W), x.dtype),
            jax.ShapeDtypeStruct((grid_n, 1, 128), jnp.float32),
        ],
        compiler_params=pltpu.CompilerParams(
            dimension_semantics=("parallel",),      # no carried state; megacore on v7x
            vmem_limit_bytes=32 * 1024 * 1024,
        ),
    )(seeds, x3)

    # --- pass 2: combine partial sums, apply the scalar scale (lane-dense XLA) ---
    total_keep = jnp.sum(psum[:, 0, 0])
    scale = (float(BC * H * W) / (total_keep + 1e-6)).astype(x.dtype)
    out = (xk[:BC] * scale).reshape(B, C, H, W)
    return out


class DropBlock2d:
    """Pallas-TPU DropBlock2d (timm fast path)."""

    def __init__(
        self,
        drop_prob: float = 0.1,
        block_size: int = 7,
        gamma_scale: float = 1.0,
        with_noise: bool = False,
        inplace: bool = False,
        batchwise: bool = False,
        fast: bool = True,
    ):
        self.drop_prob = drop_prob
        self.gamma_scale = gamma_scale
        self.block_size = block_size
        self.with_noise = with_noise
        self.inplace = inplace
        self.batchwise = batchwise
        self.fast = fast
        self.training = True  # DropBlock is identity in eval mode

    def __call__(self, x, key=None, seed: int = 0):
        if not self.training or not self.drop_prob:
            return x
        if key is None:
            key = jax.random.PRNGKey(seed)
        # Defaults: fast=True, with_noise=False -> drop_block_fast_2d path.
        return drop_block_fast_2d_pallas(
            x, key, self.drop_prob, self.block_size, self.gamma_scale
        )


if __name__ == "__main__":
    key = jax.random.PRNGKey(0)
    kx, kdrop = jax.random.split(key)
    x = jax.random.normal(kx, (2, 4, 16, 16), dtype=jnp.float32)  # NCHW

    mod = DropBlock2d(drop_prob=0.1, block_size=7)
    y = mod(x, key=kdrop)
    y = jax.block_until_ready(y)

    assert y.shape == x.shape
    assert y.dtype == x.dtype
    assert bool(jnp.all(jnp.isfinite(y)))

    # --- pure-JAX reference with the identical seed mask ----------------------
    B, C, H, W = x.shape
    cbs = min(mod.block_size, min(H, W))
    pad = cbs // 2
    gamma = _gamma(H, W, mod.drop_prob, mod.block_size, mod.gamma_scale)
    seeds_ref = jax.random.bernoulli(
        kdrop, p=gamma, shape=(B * C, H, W)).astype(jnp.float32)
    pooled_ref = lax.reduce_window(
        seeds_ref, 0.0, lax.max,
        window_dimensions=(1, cbs, cbs), window_strides=(1, 1, 1),
        padding=((0, 0), (pad, pad), (pad, pad)))
    keep_ref = 1.0 - pooled_ref
    scale_ref = (keep_ref.size / (keep_ref.sum() + 1e-6)).astype(x.dtype)
    y_ref = (x.reshape(B * C, H, W) * keep_ref * scale_ref).reshape(x.shape)
    assert bool(jnp.allclose(y, y_ref, atol=1e-5, rtol=1e-5))

    print("KERNEL_OK")
</pallas_src>

<mosaic_0001>
module attributes {stable_mosaic.version = 11 : i64} {
  func.func @_drop_block_tile_kernel(%arg0: i32, %arg1: memref<8x16x16xbf16, #tpu.memory_space<vmem>>, %arg2: memref<8x16x16xf32, #tpu.memory_space<vmem>>, %arg3: memref<8x16x16xf32, #tpu.memory_space<vmem>>, %arg4: memref<1x1x128xf32, #tpu.memory_space<vmem>>) attributes {dimension_semantics = [#tpu.dimension_semantics<parallel>], iteration_bounds = array<i64: 1>, scalar_prefetch = 0 : i64, scratch_operands = 0 : i64, tpu.core_type = #tpu.core_type<tc>, window_params = [{transform_indices = @transform_0, window_bounds = array<i64: 8, 16, 16>}, {transform_indices = @transform_1, window_bounds = array<i64: 8, 16, 16>}, {transform_indices = @transform_2, window_bounds = array<i64: 8, 16, 16>}, {transform_indices = @transform_3, window_bounds = array<i64: 1, 1, 128>}]} {
    %c0 = arith.constant 0 : index
    %c0_0 = arith.constant 0 : index
    %c0_1 = arith.constant 0 : index
    %0 = vector.load %arg1[%c0, %c0_0, %c0_1] : memref<8x16x16xbf16, #tpu.memory_space<vmem>>, vector<8x16x16xbf16>
    %1 = arith.extf %0 : vector<8x16x16xbf16> to vector<8x16x16xf32>
    %cst = arith.constant 0.000000e+00 : f32
    %2 = vector.broadcast %cst : f32 to vector<8x3x16xf32>
    %3 = tpu.concatenate %2, %1, %2 in 1 : vector<8x3x16xf32>, vector<8x16x16xf32>, vector<8x3x16xf32> -> vector<8x22x16xf32>
    %4 = vector.extract_strided_slice %3 {offsets = [0, 0, 0], sizes = [8, 16, 16], strides = [1, 1, 1]} : vector<8x22x16xf32> to vector<8x16x16xf32>
    %5 = vector.extract_strided_slice %3 {offsets = [0, 1, 0], sizes = [8, 16, 16], strides = [1, 1, 1]} : vector<8x22x16xf32> to vector<8x16x16xf32>
    %6 = arith.maximumf %4, %5 : vector<8x16x16xf32>
    %7 = vector.extract_strided_slice %3 {offsets = [0, 2, 0], sizes = [8, 16, 16], strides = [1, 1, 1]} : vector<8x22x16xf32> to vector<8x16x16xf32>
    %8 = arith.maximumf %6, %7 : vector<8x16x16xf32>
    %9 = vector.extract_strided_slice %3 {offsets = [0, 3, 0], sizes = [8, 16, 16], strides = [1, 1, 1]} : vector<8x22x16xf32> to vector<8x16x16xf32>
    %10 = arith.maximumf %8, %9 : vector<8x16x16xf32>
    %11 = vector.extract_strided_slice %3 {offsets = [0, 4, 0], sizes = [8, 16, 16], strides = [1, 1, 1]} : vector<8x22x16xf32> to vector<8x16x16xf32>
    %12 = arith.maximumf %10, %11 : vector<8x16x16xf32>
    %13 = vector.extract_strided_slice %3 {offsets = [0, 5, 0], sizes = [8, 16, 16], strides = [1, 1, 1]} : vector<8x22x16xf32> to vector<8x16x16xf32>
    %14 = arith.maximumf %12, %13 : vector<8x16x16xf32>
    %15 = vector.extract_strided_slice %3 {offsets = [0, 6, 0], sizes = [8, 16, 16], strides = [1, 1, 1]} : vector<8x22x16xf32> to vector<8x16x16xf32>
    %16 = arith.maximumf %14, %15 : vector<8x16x16xf32>
    %cst_2 = arith.constant 0.000000e+00 : f32
    %17 = vector.broadcast %cst_2 : f32 to vector<8x16x3xf32>
    %18 = tpu.concatenate %17, %16, %17 in 2 : vector<8x16x3xf32>, vector<8x16x16xf32>, vector<8x16x3xf32> -> vector<8x16x22xf32>
    %19 = vector.extract_strided_slice %18 {offsets = [0, 0, 0], sizes = [8, 16, 16], strides = [1, 1, 1]} : vector<8x16x22xf32> to vector<8x16x16xf32>
    %20 = vector.extract_strided_slice %18 {offsets = [0, 0, 1], sizes = [8, 16, 16], strides = [1, 1, 1]} : vector<8x16x22xf32> to vector<8x16x16xf32>
    %21 = arith.maximumf %19, %20 : vector<8x16x16xf32>
    %22 = vector.extract_strided_slice %18 {offsets = [0, 0, 2], sizes = [8, 16, 16], strides = [1, 1, 1]} : vector<8x16x22xf32> to vector<8x16x16xf32>
    %23 = arith.maximumf %21, %22 : vector<8x16x16xf32>
    %24 = vector.extract_strided_slice %18 {offsets = [0, 0, 3], sizes = [8, 16, 16], strides = [1, 1, 1]} : vector<8x16x22xf32> to vector<8x16x16xf32>
    %25 = arith.maximumf %23, %24 : vector<8x16x16xf32>
    %26 = vector.extract_strided_slice %18 {offsets = [0, 0, 4], sizes = [8, 16, 16], strides = [1, 1, 1]} : vector<8x16x22xf32> to vector<8x16x16xf32>
    %27 = arith.maximumf %25, %26 : vector<8x16x16xf32>
    %28 = vector.extract_strided_slice %18 {offsets = [0, 0, 5], sizes = [8, 16, 16], strides = [1, 1, 1]} : vector<8x16x22xf32> to vector<8x16x16xf32>
    %29 = arith.maximumf %27, %28 : vector<8x16x16xf32>
    %30 = vector.extract_strided_slice %18 {offsets = [0, 0, 6], sizes = [8, 16, 16], strides = [1, 1, 1]} : vector<8x16x22xf32> to vector<8x16x16xf32>
    %31 = arith.maximumf %29, %30 : vector<8x16x16xf32>
    %cst_3 = arith.constant 1.000000e+00 : f32
    %32 = vector.broadcast %cst_3 : f32 to vector<8x16x16xf32>
    %33 = arith.subf %32, %31 : vector<8x16x16xf32>
    %c0_4 = arith.constant 0 : index
    %c0_5 = arith.constant 0 : index
    %c0_6 = arith.constant 0 : index
    %34 = vector.load %arg2[%c0_4, %c0_5, %c0_6] : memref<8x16x16xf32, #tpu.memory_space<vmem>>, vector<8x16x16xf32>
    %35 = arith.mulf %34, %33 : vector<8x16x16xf32>
    %c0_7 = arith.constant 0 : index
    %c0_8 = arith.constant 0 : index
    %c0_9 = arith.constant 0 : index
    %36 = vector.load %arg3[%c0_7, %c0_8, %c0_9] : memref<8x16x16xf32, #tpu.memory_space<vmem>>, vector<8x16x16xf32>
    tpu.vector_store %arg3[%c0_7, %c0_8, %c0_9], %35 {strides = array<i32>} : memref<8x16x16xf32, #tpu.memory_space<vmem>>, vector<8x16x16xf32>,
    %37 = vector.shape_cast %33 : vector<8x16x16xf32> to vector<1x8x16x16xf32>
    %cst_10 = arith.constant dense<0.000000e+00> : vector<1xf32>
    %38 = vector.multi_reduction <add>, %37, %cst_10 [1, 2, 3] : vector<1x8x16x16xf32> to vector<1xf32>
    %39 = vector.shape_cast %38 : vector<1xf32> to vector<1x1x1x1xf32>
    %40 = vector.extract %39[0, 0, 0, 0] : f32 from vector<1x1x1x1xf32>
    %41 = vector.broadcast %40 : f32 to vector<1x1x128xf32>
    %c0_11 = arith.constant 0 : index
    %c0_12 = arith.constant 0 : index
    %c0_13 = arith.constant 0 : index
    %42 = vector.load %arg4[%c0_11, %c0_12, %c0_13] : memref<1x1x128xf32, #tpu.memory_space<vmem>>, vector<1x1x128xf32>
    tpu.vector_store %arg4[%c0_11, %c0_12, %c0_13], %41 {strides = array<i32>} : memref<1x1x128xf32, #tpu.memory_space<vmem>>, vector<1x1x128xf32>,
    return
  }
  func.func @transform_0(%arg0: i32) -> (i32, i32, i32) {
    %c0_i32 = arith.constant 0 : i32
    %c0_i32_0 = arith.constant 0 : i32
    %c0_i32_1 = arith.constant 0 : i32
    return %arg0, %c0_i32, %c0_i32_0 : i32, i32, i32
  }
  func.func @transform_1(%arg0: i32) -> (i32, i32, i32) {
    %c0_i32 = arith.constant 0 : i32
    %c0_i32_0 = arith.constant 0 : i32
    %c0_i32_1 = arith.constant 0 : i32
    return %arg0, %c0_i32, %c0_i32_0 : i32, i32, i32
  }
  func.func @transform_2(%arg0: i32) -> (i32, i32, i32) {
    %c0_i32 = arith.constant 0 : i32
    %c0_i32_0 = arith.constant 0 : i32
    %c0_i32_1 = arith.constant 0 : i32
    return %arg0, %c0_i32, %c0_i32_0 : i32, i32, i32
  }
  func.func @transform_3(%arg0: i32) -> (i32, i32, i32) {
    %c0_i32 = arith.constant 0 : i32
    %c0_i32_0 = arith.constant 0 : i32
    %c0_i32_1 = arith.constant 0 : i32
    return %arg0, %c0_i32, %c0_i32_0 : i32, i32, i32
  }
}

</mosaic_0001>

<llo_original>
// kernel: tpu_custom_call.1
$region0: #{tpu_custom_call.1}
  #allocation0 [shape = 'u32[]', space=smem, size = 0x4, offset = 0x4, fixed_abs, tag = 'smem constant byte address 0x4 - core index']
  #allocation1 [shape = 'u32[144,128]{1,0:T(1,128)}', space=vmem, size = 0x12000, scoped, tag = 'internal scratch']
  %s0 = inlined_call_operand.hbm [shape: bf16[8,16,16], index: 0, kind: input, shape index: {}]
  %s1 = inlined_call_operand.hbm [shape: f32[8,16,16], index: 1, kind: input, shape index: {}]
  %s2 = inlined_call_operand.hbm [shape: f32[8,16,16], index: 2, kind: output, shape index: {0}]
  %s3 = inlined_call_operand.hbm [shape: f32[1,1,128], index: 3, kind: output, shape index: {1}]
  %4 = xla_tuple %s2, %s3
  %s5 = sld [smem:[#allocation0]]
  $region34: #{tpu_custom_call.1} parent=0
    _
  %s7 = ssub.s32 1, %s5
  %s8 = scalar_select 0, %s7, %s5
  $region1: #{tpu_custom_call.1} parent=0
    #allocation2 [shape = 'u8[32768]{0}', space=vmem, size = 0x8000, scoped, tag = 'input window, operand 0, single buffered']
    #allocation3 [shape = 's32[1]{0}', space=sflag, size = 0x4, scoped, tag = 'scoped memory for tpu_custom_call.1']
    #allocation4 [shape = 's32[1]{0}', space=sflag, size = 0x4, scoped, tag = 'scoped memory for tpu_custom_call.1']
    #allocation5 [shape = 'u8[65536]{0}', space=vmem, size = 0x10000, scoped, tag = 'input window, operand 1, single buffered']
    #allocation6 [shape = 's32[1]{0}', space=sflag, size = 0x4, scoped, tag = 'scoped memory for tpu_custom_call.1']
    #allocation7 [shape = 'u8[65536]{0}', space=vmem, size = 0x10000, scoped, tag = 'output window, operand 0, single buffered']
    #allocation8 [shape = 'u8[512]{0}', space=vmem, size = 0x400, scoped, tag = 'output window, operand 1, single buffered']
    #allocation9 [shape = 's32[1]{0}', space=sflag, size = 0x4, scoped, tag = 'scoped memory for tpu_custom_call.1']
    %9 = vsyncpa [#allocation3], 0
    %10 = vsyncpa [#allocation6], 0
    %11 = vsyncpa [#allocation4], 0
    %12 = vsyncpa [#allocation9], 0
    // Predicated region
    $region2: #{tpu_custom_call.1} parent=1 // pred_check
      _
    $region3: #{tpu_custom_call.1} parent=1 // pred_check_branch
      %14 = sbr.rel (0) target = $region5
    $region4: #{tpu_custom_call.1} parent=1 // pred_region
      %s16 = ssub.s32 1024, 1024
      %17 = vsyncadd [#allocation3], %s16
      %s18 = sshll.u32 [#allocation2], 4
      %s19 = int_to_ptr.vmem [resolvable:$true] %s18
      %24 = dma.hbm_to_vmem [thread:$0]  %s0, 1024, %s19, [#allocation3], 64, 64, 4
    $region5: #{tpu_custom_call.1} parent=1 // pred_fallthru
      _
    // Predicated region
    $region6: #{tpu_custom_call.1} parent=1 // pred_check
      _
    $region7: #{tpu_custom_call.1} parent=1 // pred_check_branch
      %26 = sbr.rel (0) target = $region9
    $region8: #{tpu_custom_call.1} parent=1 // pred_region
      %s28 = ssub.s32 2048, 2048
      %29 = vsyncadd [#allocation6], %s28
      %s30 = sshll.u32 [#allocation5], 4
      %s31 = int_to_ptr.vmem [resolvable:$true] %s30
      %36 = dma.hbm_to_vmem [thread:$0]  %s1, 2048, %s31, [#allocation6], 128, 128, 8
    $region9: #{tpu_custom_call.1} parent=1 // pred_fallthru
      _
    // Predicated region
    $region10: #{tpu_custom_call.1} parent=1 // pred_check
      _
    $region11: #{tpu_custom_call.1} parent=1 // pred_check_branch
      %38 = sbr.rel (0) target = $region13
    $region12: #{tpu_custom_call.1} parent=1 // pred_region
      %39 = dma.done [#allocation3], 1024
    $region13: #{tpu_custom_call.1} parent=1 // pred_fallthru
      _
    // Predicated region
    $region14: #{tpu_custom_call.1} parent=1 // pred_check
      _
    $region15: #{tpu_custom_call.1} parent=1 // pred_check_branch
      %41 = sbr.rel (0) target = $region17
    $region16: #{tpu_custom_call.1} parent=1 // pred_region
      %42 = dma.done [#allocation6], 2048
    $region17: #{tpu_custom_call.1} parent=1 // pred_fallthru
      _
    %v43 = vld [vmem:[#allocation2] sm:$0xf]
    %v44 = vld [vmem:[#allocation2 + $0x4] sm:$0xf]
    %v45 = vld [vmem:[#allocation2 + $0x8] sm:$0xf]
    %v46 = vld [vmem:[#allocation2 + $0xc] sm:$0xf]
    %v47 = vld [vmem:[#allocation2 + $0x10] sm:$0xf]
    %v48 = vld [vmem:[#allocation2 + $0x14] sm:$0xf]
    %v49 = vld [vmem:[#allocation2 + $0x18] sm:$0xf]
    %v50 = vld [vmem:[#allocation2 + $0x1c] sm:$0xf]
    %v51 = vld [vmem:[#allocation2 + $0x20] sm:$0xf]
    %v52 = vld [vmem:[#allocation2 + $0x24] sm:$0xf]
    %v53 = vld [vmem:[#allocation2 + $0x28] sm:$0xf]
    %v54 = vld [vmem:[#allocation2 + $0x2c] sm:$0xf]
    %v55 = vld [vmem:[#allocation2 + $0x30] sm:$0xf]
    %v56 = vld [vmem:[#allocation2 + $0x34] sm:$0xf]
    %v57 = vld [vmem:[#allocation2 + $0x38] sm:$0xf]
    %v58 = vld [vmem:[#allocation2 + $0x3c] sm:$0xf]
    %v59 = vunpack.c.l.bf16 %v43
    %v60 = vunpack.c.l.bf16 %v44
    %v61 = vunpack.c.l.bf16 %v45
    %v62 = vunpack.c.l.bf16 %v46
    %v63 = vunpack.c.l.bf16 %v47
    %v64 = vunpack.c.l.bf16 %v48
    %v65 = vunpack.c.l.bf16 %v49
    %v66 = vunpack.c.l.bf16 %v50
    %v67 = vunpack.c.l.bf16 %v51
    %v68 = vunpack.c.l.bf16 %v52
    %v69 = vunpack.c.l.bf16 %v53
    %v70 = vunpack.c.l.bf16 %v54
    %v71 = vunpack.c.l.bf16 %v55
    %v72 = vunpack.c.l.bf16 %v56
    %v73 = vunpack.c.l.bf16 %v57
    %v74 = vunpack.c.l.bf16 %v58
    %vm91 = vcmask 1042432
    %v92 = vrot.slane %v59, 5
    %v93 = vrot.slane %v60, 5
    %v94 = vsel %vm91, %v92, %v93
    %v95 = vrot.slane %v61, 5
    %v96 = vrot.slane %v62, 5
    %v97 = vsel %vm91, %v95, %v96
    %v98 = vrot.slane %v63, 5
    %v99 = vrot.slane %v64, 5
    %v100 = vsel %vm91, %v98, %v99
    %v101 = vrot.slane %v65, 5
    %v102 = vrot.slane %v66, 5
    %v103 = vsel %vm91, %v101, %v102
    %v104 = vrot.slane %v67, 5
    %v105 = vrot.slane %v68, 5
    %v106 = vsel %vm91, %v104, %v105
    %v107 = vrot.slane %v69, 5
    %v108 = vrot.slane %v70, 5
    %v109 = vsel %vm91, %v107, %v108
    %v110 = vrot.slane %v71, 5
    %v111 = vrot.slane %v72, 5
    %v112 = vsel %vm91, %v110, %v111
    %v113 = vrot.slane %v73, 5
    %v114 = vrot.slane %v74, 5
    %v115 = vsel %vm91, %v113, %v114
    %v140 = vsel %vm91, 0.0, %v92
    %v141 = vsel %vm91, 0.0, %v95
    %v142 = vsel %vm91, 0.0, %v98
    %v143 = vsel %vm91, 0.0, %v101
    %v144 = vsel %vm91, 0.0, %v104
    %v145 = vsel %vm91, 0.0, %v107
    %v146 = vsel %vm91, 0.0, %v110
    %v147 = vsel %vm91, 0.0, %v113
    %v148 = vsel %vm91, %v93, 0.0
    %v149 = vsel %vm91, %v96, 0.0
    %v150 = vsel %vm91, %v99, 0.0
    %v151 = vsel %vm91, %v102, 0.0
    %v152 = vsel %vm91, %v105, 0.0
    %v153 = vsel %vm91, %v108, 0.0
    %v154 = vsel %vm91, %v111, 0.0
    %v155 = vsel %vm91, %v114, 0.0
    %vm172 = vcmask 1046528
    %v173 = vrot.slane %v140, 1
    %v174 = vrot.slane %v94, 1
    %v175 = vsel %vm172, %v173, %v174
    %v176 = vrot.slane %v148, 1
    %v177 = vsel %vm172, %v174, %v176
    %v178 = vrot.slane %v141, 1
    %v179 = vrot.slane %v97, 1
    %v180 = vsel %vm172, %v178, %v179
    %v181 = vrot.slane %v149, 1
    %v182 = vsel %vm172, %v179, %v181
    %v183 = vrot.slane %v142, 1
    %v184 = vrot.slane %v100, 1
    %v185 = vsel %vm172, %v183, %v184
    %v186 = vrot.slane %v150, 1
    %v187 = vsel %vm172, %v184, %v186
    %v188 = vrot.slane %v143, 1
    %v189 = vrot.slane %v103, 1
    %v190 = vsel %vm172, %v188, %v189
    %v191 = vrot.slane %v151, 1
    %v192 = vsel %vm172, %v189, %v191
    %v193 = vrot.slane %v144, 1
    %v194 = vrot.slane %v106, 1
    %v195 = vsel %vm172, %v193, %v194
    %v196 = vrot.slane %v152, 1
    %v197 = vsel %vm172, %v194, %v196
    %v198 = vrot.slane %v145, 1
    %v199 = vrot.slane %v109, 1
    %v200 = vsel %vm172, %v198, %v199
    %v201 = vrot.slane %v153, 1
    %v202 = vsel %vm172, %v199, %v201
    %v203 = vrot.slane %v146, 1
    %v204 = vrot.slane %v112, 1
    %v205 = vsel %vm172, %v203, %v204
    %v206 = vrot.slane %v154, 1
    %v207 = vsel %vm172, %v204, %v206
    %v208 = vrot.slane %v147, 1
    %v209 = vrot.slane %v115, 1
    %v210 = vsel %vm172, %v208, %v209
    %v211 = vrot.slane %v155, 1
    %v212 = vsel %vm172, %v209, %v211
    %v229 = vmax.f32 %v140, %v175
    %v230 = vmax.f32 %v94, %v177
    %v231 = vmax.f32 %v141, %v180
    %v232 = vmax.f32 %v97, %v182
    %v233 = vmax.f32 %v142, %v185
    %v234 = vmax.f32 %v100, %v187
    %v235 = vmax.f32 %v143, %v190
    %v236 = vmax.f32 %v103, %v192
    %v237 = vmax.f32 %v144, %v195
    %v238 = vmax.f32 %v106, %v197
    %v239 = vmax.f32 %v145, %v200
    %v240 = vmax.f32 %v109, %v202
    %v241 = vmax.f32 %v146, %v205
    %v242 = vmax.f32 %v112, %v207
    %v243 = vmax.f32 %v147, %v210
    %v244 = vmax.f32 %v115, %v212
    %vm245 = vcmask 1045504
    %v246 = vrot.slane %v140, 2
    %v247 = vrot.slane %v94, 2
    %v248 = vsel %vm245, %v246, %v247
    %v249 = vrot.slane %v148, 2
    %v250 = vsel %vm245, %v247, %v249
    %v251 = vrot.slane %v141, 2
    %v252 = vrot.slane %v97, 2
    %v253 = vsel %vm245, %v251, %v252
    %v254 = vrot.slane %v149, 2
    %v255 = vsel %vm245, %v252, %v254
    %v256 = vrot.slane %v142, 2
    %v257 = vrot.slane %v100, 2
    %v258 = vsel %vm245, %v256, %v257
    %v259 = vrot.slane %v150, 2
    %v260 = vsel %vm245, %v257, %v259
    %v261 = vrot.slane %v143, 2
    %v262 = vrot.slane %v103, 2
    %v263 = vsel %vm245, %v261, %v262
    %v264 = vrot.slane %v151, 2
    %v265 = vsel %vm245, %v262, %v264
    %v266 = vrot.slane %v144, 2
    %v267 = vrot.slane %v106, 2
    %v268 = vsel %vm245, %v266, %v267
    %v269 = vrot.slane %v152, 2
    %v270 = vsel %vm245, %v267, %v269
    %v271 = vrot.slane %v145, 2
    %v272 = vrot.slane %v109, 2
    %v273 = vsel %vm245, %v271, %v272
    %v274 = vrot.slane %v153, 2
    %v275 = vsel %vm245, %v272, %v274
    %v276 = vrot.slane %v146, 2
    %v277 = vrot.slane %v112, 2
    %v278 = vsel %vm245, %v276, %v277
    %v279 = vrot.slane %v154, 2
    %v280 = vsel %vm245, %v277, %v279
    %v281 = vrot.slane %v147, 2
    %v282 = vrot.slane %v115, 2
    %v283 = vsel %vm245, %v281, %v282
    %v284 = vrot.slane %v155, 2
    %v285 = vsel %vm245, %v282, %v284
    %v302 = vmax.f32 %v229, %v248
    %v303 = vmax.f32 %v230, %v250
    %v304 = vmax.f32 %v231, %v253
    %v305 = vmax.f32 %v232, %v255
    %v306 = vmax.f32 %v233, %v258
    %v307 = vmax.f32 %v234, %v260
    %v308 = vmax.f32 %v235, %v263
    %v309 = vmax.f32 %v236, %v265
    %v310 = vmax.f32 %v237, %v268
    %v311 = vmax.f32 %v238, %v270
    %v312 = vmax.f32 %v239, %v273
    %v313 = vmax.f32 %v240, %v275
    %v314 = vmax.f32 %v241, %v278
    %v315 = vmax.f32 %v242, %v280
    %v316 = vmax.f32 %v243, %v283
    %v317 = vmax.f32 %v244, %v285
    %vm318 = vcmask 1044480
    %v319 = vrot.slane %v140, 3
    %v320 = vrot.slane %v94, 3
    %v321 = vsel %vm318, %v319, %v320
    %v322 = vrot.slane %v148, 3
    %v323 = vsel %vm318, %v320, %v322
    %v324 = vrot.slane %v141, 3
    %v325 = vrot.slane %v97, 3
    %v326 = vsel %vm318, %v324, %v325
    %v327 = vrot.slane %v149, 3
    %v328 = vsel %vm318, %v325, %v327
    %v329 = vrot.slane %v142, 3
    %v330 = vrot.slane %v100, 3
    %v331 = vsel %vm318, %v329, %v330
    %v332 = vrot.slane %v150, 3
    %v333 = vsel %vm318, %v330, %v332
    %v334 = vrot.slane %v143, 3
    %v335 = vrot.slane %v103, 3
    %v336 = vsel %vm318, %v334, %v335
    %v337 = vrot.slane %v151, 3
    %v338 = vsel %vm318, %v335, %v337
    %v339 = vrot.slane %v144, 3
    %v340 = vrot.slane %v106, 3
    %v341 = vsel %vm318, %v339, %v340
    %v342 = vrot.slane %v152, 3
    %v343 = vsel %vm318, %v340, %v342
    %v344 = vrot.slane %v145, 3
    %v345 = vrot.slane %v109, 3
    %v346 = vsel %vm318, %v344, %v345
    %v347 = vrot.slane %v153, 3
    %v348 = vsel %vm318, %v345, %v347
    %v349 = vrot.slane %v146, 3
    %v350 = vrot.slane %v112, 3
    %v351 = vsel %vm318, %v349, %v350
    %v352 = vrot.slane %v154, 3
    %v353 = vsel %vm318, %v350, %v352
    %v354 = vrot.slane %v147, 3
    %v355 = vrot.slane %v115, 3
    %v356 = vsel %vm318, %v354, %v355
    %v357 = vrot.slane %v155, 3
    %v358 = vsel %vm318, %v355, %v357
    %v375 = vmax.f32 %v302, %v321
    %v376 = vmax.f32 %v303, %v323
    %v377 = vmax.f32 %v304, %v326
    %v378 = vmax.f32 %v305, %v328
    %v379 = vmax.f32 %v306, %v331
    %v380 = vmax.f32 %v307, %v333
    %v381 = vmax.f32 %v308, %v336
    %v382 = vmax.f32 %v309, %v338
    %v383 = vmax.f32 %v310, %v341
    %v384 = vmax.f32 %v311, %v343
    %v385 = vmax.f32 %v312, %v346
    %v386 = vmax.f32 %v313, %v348
    %v387 = vmax.f32 %v314, %v351
    %v388 = vmax.f32 %v315, %v353
    %v389 = vmax.f32 %v316, %v356
    %v390 = vmax.f32 %v317, %v358
    %vm391 = vcmask 1043456
    %v392 = vrot.slane %v140, 4
    %v393 = vrot.slane %v94, 4
    %v394 = vsel %vm391, %v392, %v393
    %v395 = vrot.slane %v148, 4
    %v396 = vsel %vm391, %v393, %v395
    %v397 = vrot.slane %v141, 4
    %v398 = vrot.slane %v97, 4
    %v399 = vsel %vm391, %v397, %v398
    %v400 = vrot.slane %v149, 4
    %v401 = vsel %vm391, %v398, %v400
    %v402 = vrot.slane %v142, 4
    %v403 = vrot.slane %v100, 4
    %v404 = vsel %vm391, %v402, %v403
    %v405 = vrot.slane %v150, 4
    %v406 = vsel %vm391, %v403, %v405
    %v407 = vrot.slane %v143, 4
    %v408 = vrot.slane %v103, 4
    %v409 = vsel %vm391, %v407, %v408
    %v410 = vrot.slane %v151, 4
    %v411 = vsel %vm391, %v408, %v410
    %v412 = vrot.slane %v144, 4
    %v413 = vrot.slane %v106, 4
    %v414 = vsel %vm391, %v412, %v413
    %v415 = vrot.slane %v152, 4
    %v416 = vsel %vm391, %v413, %v415
    %v417 = vrot.slane %v145, 4
    %v418 = vrot.slane %v109, 4
    %v419 = vsel %vm391, %v417, %v418
    %v420 = vrot.slane %v153, 4
    %v421 = vsel %vm391, %v418, %v420
    %v422 = vrot.slane %v146, 4
    %v423 = vrot.slane %v112, 4
    %v424 = vsel %vm391, %v422, %v423
    %v425 = vrot.slane %v154, 4
    %v426 = vsel %vm391, %v423, %v425
    %v427 = vrot.slane %v147, 4
    %v428 = vrot.slane %v115, 4
    %v429 = vsel %vm391, %v427, %v428
    %v430 = vrot.slane %v155, 4
    %v431 = vsel %vm391, %v428, %v430
    %v448 = vmax.f32 %v375, %v394
    %v449 = vmax.f32 %v376, %v396
    %v450 = vmax.f32 %v377, %v399
    %v451 = vmax.f32 %v378, %v401
    %v452 = vmax.f32 %v379, %v404
    %v453 = vmax.f32 %v380, %v406
    %v454 = vmax.f32 %v381, %v409
    %v455 = vmax.f32 %v382, %v411
    %v456 = vmax.f32 %v383, %v414
    %v457 = vmax.f32 %v384, %v416
    %v458 = vmax.f32 %v385, %v419
    %v459 = vmax.f32 %v386, %v421
    %v460 = vmax.f32 %v387, %v424
    %v461 = vmax.f32 %v388, %v426
    %v462 = vmax.f32 %v389, %v429
    %v463 = vmax.f32 %v390, %v431
    %v464 = vrot.slane %v140, 5
    %v465 = vrot.slane %v94, 5
    %v466 = vsel %vm91, %v464, %v465
    %v467 = vrot.slane %v148, 5
    %v468 = vsel %vm91, %v465, %v467
    %v469 = vrot.slane %v141, 5
    %v470 = vrot.slane %v97, 5
    %v471 = vsel %vm91, %v469, %v470
    %v472 = vrot.slane %v149, 5
    %v473 = vsel %vm91, %v470, %v472
    %v474 = vrot.slane %v142, 5
    %v475 = vrot.slane %v100, 5
    %v476 = vsel %vm91, %v474, %v475
    %v477 = vrot.slane %v150, 5
    %v478 = vsel %vm91, %v475, %v477
    %v479 = vrot.slane %v143, 5
    %v480 = vrot.slane %v103, 5
    %v481 = vsel %vm91, %v479, %v480
    %v482 = vrot.slane %v151, 5
    %v483 = vsel %vm91, %v480, %v482
    %v484 = vrot.slane %v144, 5
    %v485 = vrot.slane %v106, 5
    %v486 = vsel %vm91, %v484, %v485
    %v487 = vrot.slane %v152, 5
    %v488 = vsel %vm91, %v485, %v487
    %v489 = vrot.slane %v145, 5
    %v490 = vrot.slane %v109, 5
    %v491 = vsel %vm91, %v489, %v490
    %v492 = vrot.slane %v153, 5
    %v493 = vsel %vm91, %v490, %v492
    %v494 = vrot.slane %v146, 5
    %v495 = vrot.slane %v112, 5
    %v496 = vsel %vm91, %v494, %v495
    %v497 = vrot.slane %v154, 5
    %v498 = vsel %vm91, %v495, %v497
    %v499 = vrot.slane %v147, 5
    %v500 = vrot.slane %v115, 5
    %v501 = vsel %vm91, %v499, %v500
    %v502 = vrot.slane %v155, 5
    %v503 = vsel %vm91, %v500, %v502
    %v520 = vmax.f32 %v448, %v466
    %v521 = vmax.f32 %v449, %v468
    %v522 = vmax.f32 %v450, %v471
    %v523 = vmax.f32 %v451, %v473
    %v524 = vmax.f32 %v452, %v476
    %v525 = vmax.f32 %v453, %v478
    %v526 = vmax.f32 %v454, %v481
    %v527 = vmax.f32 %v455, %v483
    %v528 = vmax.f32 %v456, %v486
    %v529 = vmax.f32 %v457, %v488
    %v530 = vmax.f32 %v458, %v491
    %v531 = vmax.f32 %v459, %v493
    %v532 = vmax.f32 %v460, %v496
    %v533 = vmax.f32 %v461, %v498
    %v534 = vmax.f32 %v462, %v501
    %v535 = vmax.f32 %v463, %v503
    %vm536 = vcmask 1041408
    %v537 = vrot.slane %v140, 6
    %v538 = vrot.slane %v94, 6
    %v539 = vsel %vm536, %v537, %v538
    %v540 = vrot.slane %v148, 6
    %v541 = vsel %vm536, %v538, %v540
    %v542 = vrot.slane %v141, 6
    %v543 = vrot.slane %v97, 6
    %v544 = vsel %vm536, %v542, %v543
    %v545 = vrot.slane %v149, 6
    %v546 = vsel %vm536, %v543, %v545
    %v547 = vrot.slane %v142, 6
    %v548 = vrot.slane %v100, 6
    %v549 = vsel %vm536, %v547, %v548
    %v550 = vrot.slane %v150, 6
    %v551 = vsel %vm536, %v548, %v550
    %v552 = vrot.slane %v143, 6
    %v553 = vrot.slane %v103, 6
    %v554 = vsel %vm536, %v552, %v553
    %v555 = vrot.slane %v151, 6
    %v556 = vsel %vm536, %v553, %v555
    %v557 = vrot.slane %v144, 6
    %v558 = vrot.slane %v106, 6
    %v559 = vsel %vm536, %v557, %v558
    %v560 = vrot.slane %v152, 6
    %v561 = vsel %vm536, %v558, %v560
    %v562 = vrot.slane %v145, 6
    %v563 = vrot.slane %v109, 6
    %v564 = vsel %vm536, %v562, %v563
    %v565 = vrot.slane %v153, 6
    %v566 = vsel %vm536, %v563, %v565
    %v567 = vrot.slane %v146, 6
    %v568 = vrot.slane %v112, 6
    %v569 = vsel %vm536, %v567, %v568
    %v570 = vrot.slane %v154, 6
    %v571 = vsel %vm536, %v568, %v570
    %v572 = vrot.slane %v147, 6
    %v573 = vrot.slane %v115, 6
    %v574 = vsel %vm536, %v572, %v573
    %v575 = vrot.slane %v155, 6
    %v576 = vsel %vm536, %v573, %v575
    %v593 = vmax.f32 %v520, %v539
    %v594 = vmax.f32 %v521, %v541
    %v595 = vmax.f32 %v522, %v544
    %v596 = vmax.f32 %v523, %v546
    %v597 = vmax.f32 %v524, %v549
    %v598 = vmax.f32 %v525, %v551
    %v599 = vmax.f32 %v526, %v554
    %v600 = vmax.f32 %v527, %v556
    %v601 = vmax.f32 %v528, %v559
    %v602 = vmax.f32 %v529, %v561
    %v603 = vmax.f32 %v530, %v564
    %v604 = vmax.f32 %v531, %v566
    %v605 = vmax.f32 %v532, %v569
    %v606 = vmax.f32 %v533, %v571
    %v607 = vmax.f32 %v534, %v574
    %v608 = vmax.f32 %v535, %v576
    %625 = vrot.lane.b32.xlu0 %v593, 3
    %v626 = vpop.permute.xlu0 %625
    %627 = vrot.lane.b32.xlu0 %v594, 3
    %v628 = vpop.permute.xlu0 %627
    %629 = vrot.lane.b32.xlu0 %v595, 3
    %v630 = vpop.permute.xlu0 %629
    %631 = vrot.lane.b32.xlu0 %v596, 3
    %v632 = vpop.permute.xlu0 %631
    %633 = vrot.lane.b32.xlu0 %v597, 3
    %v634 = vpop.permute.xlu0 %633
    %635 = vrot.lane.b32.xlu0 %v598, 3
    %v636 = vpop.permute.xlu0 %635
    %637 = vrot.lane.b32.xlu0 %v599, 3
    %v638 = vpop.permute.xlu0 %637
    %639 = vrot.lane.b32.xlu0 %v600, 3
    %v640 = vpop.permute.xlu0 %639
    %641 = vrot.lane.b32.xlu0 %v601, 3
    %v642 = vpop.permute.xlu0 %641
    %643 = vrot.lane.b32.xlu0 %v602, 3
    %v644 = vpop.permute.xlu0 %643
    %645 = vrot.lane.b32.xlu0 %v603, 3
    %v646 = vpop.permute.xlu0 %645
    %647 = vrot.lane.b32.xlu0 %v604, 3
    %v648 = vpop.permute.xlu0 %647
    %649 = vrot.lane.b32.xlu0 %v605, 3
    %v650 = vpop.permute.xlu0 %649
    %651 = vrot.lane.b32.xlu0 %v606, 3
    %v652 = vpop.permute.xlu0 %651
    %653 = vrot.lane.b32.xlu0 %v607, 3
    %v654 = vpop.permute.xlu0 %653
    %655 = vrot.lane.b32.xlu0 %v608, 3
    %v656 = vpop.permute.xlu0 %655
    %vm673 = vcmask 23552
    %v674 = vsel %vm673, 0.0, %v626
    %v675 = vsel %vm673, 0.0, %v628
    %v676 = vsel %vm673, 0.0, %v630
    %v677 = vsel %vm673, 0.0, %v632
    %v678 = vsel %vm673, 0.0, %v634
    %v679 = vsel %vm673, 0.0, %v636
    %v680 = vsel %vm673, 0.0, %v638
    %v681 = vsel %vm673, 0.0, %v640
    %v682 = vsel %vm673, 0.0, %v642
    %v683 = vsel %vm673, 0.0, %v644
    %v684 = vsel %vm673, 0.0, %v646
    %v685 = vsel %vm673, 0.0, %v648
    %v686 = vsel %vm673, 0.0, %v650
    %v687 = vsel %vm673, 0.0, %v652
    %v688 = vsel %vm673, 0.0, %v654
    %v689 = vsel %vm673, 0.0, %v656
    %vm690 = vcmask 154624
    %v691 = vsel %vm690, %v674, 0.0
    %v692 = vsel %vm690, %v675, 0.0
    %v693 = vsel %vm690, %v676, 0.0
    %v694 = vsel %vm690, %v677, 0.0
    %v695 = vsel %vm690, %v678, 0.0
    %v696 = vsel %vm690, %v679, 0.0
    %v697 = vsel %vm690, %v680, 0.0
    %v698 = vsel %vm690, %v681, 0.0
    %v699 = vsel %vm690, %v682, 0.0
    %v700 = vsel %vm690, %v683, 0.0
    %v701 = vsel %vm690, %v684, 0.0
    %v702 = vsel %vm690, %v685, 0.0
    %v703 = vsel %vm690, %v686, 0.0
    %v704 = vsel %vm690, %v687, 0.0
    %v705 = vsel %vm690, %v688, 0.0
    %v706 = vsel %vm690, %v689, 0.0
    %723 = vrot.lane.b32.xlu0 %v691, 127
    %v724 = vpop.permute.xlu0 %723
    %725 = vrot.lane.b32.xlu0 %v692, 127
    %v726 = vpop.permute.xlu0 %725
    %727 = vrot.lane.b32.xlu0 %v693, 127
    %v728 = vpop.permute.xlu0 %727
    %729 = vrot.lane.b32.xlu0 %v694, 127
    %v730 = vpop.permute.xlu0 %729
    %731 = vrot.lane.b32.xlu0 %v695, 127
    %v732 = vpop.permute.xlu0 %731
    %733 = vrot.lane.b32.xlu0 %v696, 127
    %v734 = vpop.permute.xlu0 %733
    %735 = vrot.lane.b32.xlu0 %v697, 127
    %v736 = vpop.permute.xlu0 %735
    %737 = vrot.lane.b32.xlu0 %v698, 127
    %v738 = vpop.permute.xlu0 %737
    %739 = vrot.lane.b32.xlu0 %v699, 127
    %v740 = vpop.permute.xlu0 %739
    %741 = vrot.lane.b32.xlu0 %v700, 127
    %v742 = vpop.permute.xlu0 %741
    %743 = vrot.lane.b32.xlu0 %v701, 127
    %v744 = vpop.permute.xlu0 %743
    %745 = vrot.lane.b32.xlu0 %v702, 127
    %v746 = vpop.permute.xlu0 %745
    %747 = vrot.lane.b32.xlu0 %v703, 127
    %v748 = vpop.permute.xlu0 %747
    %749 = vrot.lane.b32.xlu0 %v704, 127
    %v750 = vpop.permute.xlu0 %749
    %751 = vrot.lane.b32.xlu0 %v705, 127
    %v752 = vpop.permute.xlu0 %751
    %753 = vrot.lane.b32.xlu0 %v706, 127
    %v754 = vpop.permute.xlu0 %753
    %v771 = vmax.f32 %v691, %v724
    %v772 = vmax.f32 %v692, %v726
    %v773 = vmax.f32 %v693, %v728
    %v774 = vmax.f32 %v694, %v730
    %v775 = vmax.f32 %v695, %v732
    %v776 = vmax.f32 %v696, %v734
    %v777 = vmax.f32 %v697, %v736
    %v778 = vmax.f32 %v698, %v738
    %v779 = vmax.f32 %v699, %v740
    %v780 = vmax.f32 %v700, %v742
    %v781 = vmax.f32 %v701, %v744
    %v782 = vmax.f32 %v702, %v746
    %v783 = vmax.f32 %v703, %v748
    %v784 = vmax.f32 %v704, %v750
    %v785 = vmax.f32 %v705, %v752
    %v786 = vmax.f32 %v706, %v754
    %787 = vrot.lane.b32.xlu0 %v691, 126
    %v788 = vpop.permute.xlu0 %787
    %789 = vrot.lane.b32.xlu0 %v692, 126
    %v790 = vpop.permute.xlu0 %789
    %791 = vrot.lane.b32.xlu0 %v693, 126
    %v792 = vpop.permute.xlu0 %791
    %793 = vrot.lane.b32.xlu0 %v694, 126
    %v794 = vpop.permute.xlu0 %793
    %795 = vrot.lane.b32.xlu0 %v695, 126
    %v796 = vpop.permute.xlu0 %795
    %797 = vrot.lane.b32.xlu0 %v696, 126
    %v798 = vpop.permute.xlu0 %797
    %799 = vrot.lane.b32.xlu0 %v697, 126
    %v800 = vpop.permute.xlu0 %799
    %801 = vrot.lane.b32.xlu0 %v698, 126
    %v802 = vpop.permute.xlu0 %801
    %803 = vrot.lane.b32.xlu0 %v699, 126
    %v804 = vpop.permute.xlu0 %803
    %805 = vrot.lane.b32.xlu0 %v700, 126
    %v806 = vpop.permute.xlu0 %805
    %807 = vrot.lane.b32.xlu0 %v701, 126
    %v808 = vpop.permute.xlu0 %807
    %809 = vrot.lane.b32.xlu0 %v702, 126
    %v810 = vpop.permute.xlu0 %809
    %811 = vrot.lane.b32.xlu0 %v703, 126
    %v812 = vpop.permute.xlu0 %811
    %813 = vrot.lane.b32.xlu0 %v704, 126
    %v814 = vpop.permute.xlu0 %813
    %815 = vrot.lane.b32.xlu0 %v705, 126
    %v816 = vpop.permute.xlu0 %815
    %817 = vrot.lane.b32.xlu0 %v706, 126
    %v818 = vpop.permute.xlu0 %817
    %v835 = vmax.f32 %v771, %v788
    %v836 = vmax.f32 %v772, %v790
    %v837 = vmax.f32 %v773, %v792
    %v838 = vmax.f32 %v774, %v794
    %v839 = vmax.f32 %v775, %v796
    %v840 = vmax.f32 %v776, %v798
    %v841 = vmax.f32 %v777, %v800
    %v842 = vmax.f32 %v778, %v802
    %v843 = vmax.f32 %v779, %v804
    %v844 = vmax.f32 %v780, %v806
    %v845 = vmax.f32 %v781, %v808
    %v846 = vmax.f32 %v782, %v810
    %v847 = vmax.f32 %v783, %v812
    %v848 = vmax.f32 %v784, %v814
    %v849 = vmax.f32 %v785, %v816
    %v850 = vmax.f32 %v786, %v818
    %851 = vrot.lane.b32.xlu0 %v691, 125
    %v852 = vpop.permute.xlu0 %851
    %853 = vrot.lane.b32.xlu0 %v692, 125
    %v854 = vpop.permute.xlu0 %853
    %855 = vrot.lane.b32.xlu0 %v693, 125
    %v856 = vpop.permute.xlu0 %855
    %857 = vrot.lane.b32.xlu0 %v694, 125
    %v858 = vpop.permute.xlu0 %857
    %859 = vrot.lane.b32.xlu0 %v695, 125
    %v860 = vpop.permute.xlu0 %859
    %861 = vrot.lane.b32.xlu0 %v696, 125
    %v862 = vpop.permute.xlu0 %861
    %863 = vrot.lane.b32.xlu0 %v697, 125
    %v864 = vpop.permute.xlu0 %863
    %865 = vrot.lane.b32.xlu0 %v698, 125
    %v866 = vpop.permute.xlu0 %865
    %867 = vrot.lane.b32.xlu0 %v699, 125
    %v868 = vpop.permute.xlu0 %867
    %869 = vrot.lane.b32.xlu0 %v700, 125
    %v870 = vpop.permute.xlu0 %869
    %871 = vrot.lane.b32.xlu0 %v701, 125
    %v872 = vpop.permute.xlu0 %871
    %873 = vrot.lane.b32.xlu0 %v702, 125
    %v874 = vpop.permute.xlu0 %873
    %875 = vrot.lane.b32.xlu0 %v703, 125
    %v876 = vpop.permute.xlu0 %875
    %877 = vrot.lane.b32.xlu0 %v704, 125
    %v878 = vpop.permute.xlu0 %877
    %879 = vrot.lane.b32.xlu0 %v705, 125
    %v880 = vpop.permute.xlu0 %879
    %881 = vrot.lane.b32.xlu0 %v706, 125
    %v882 = vpop.permute.xlu0 %881
    %v899 = vmax.f32 %v835, %v852
    %v900 = vmax.f32 %v836, %v854
    %v901 = vmax.f32 %v837, %v856
    %v902 = vmax.f32 %v838, %v858
    %v903 = vmax.f32 %v839, %v860
    %v904 = vmax.f32 %v840, %v862
    %v905 = vmax.f32 %v841, %v864
    %v906 = vmax.f32 %v842, %v866
    %v907 = vmax.f32 %v843, %v868
    %v908 = vmax.f32 %v844, %v870
    %v909 = vmax.f32 %v845, %v872
    %v910 = vmax.f32 %v846, %v874
    %v911 = vmax.f32 %v847, %v876
    %v912 = vmax.f32 %v848, %v878
    %v913 = vmax.f32 %v849, %v880
    %v914 = vmax.f32 %v850, %v882
    %915 = vrot.lane.b32.xlu0 %v691, 124
    %v916 = vpop.permute.xlu0 %915
    %917 = vrot.lane.b32.xlu0 %v692, 124
    %v918 = vpop.permute.xlu0 %917
    %919 = vrot.lane.b32.xlu0 %v693, 124
    %v920 = vpop.permute.xlu0 %919
    %921 = vrot.lane.b32.xlu0 %v694, 124
    %v922 = vpop.permute.xlu0 %921
    %923 = vrot.lane.b32.xlu0 %v695, 124
    %v924 = vpop.permute.xlu0 %923
    %925 = vrot.lane.b32.xlu0 %v696, 124
    %v926 = vpop.permute.xlu0 %925
    %927 = vrot.lane.b32.xlu0 %v697, 124
    %v928 = vpop.permute.xlu0 %927
    %929 = vrot.lane.b32.xlu0 %v698, 124
    %v930 = vpop.permute.xlu0 %929
    %931 = vrot.lane.b32.xlu0 %v699, 124
    %v932 = vpop.permute.xlu0 %931
    %933 = vrot.lane.b32.xlu0 %v700, 124
    %v934 = vpop.permute.xlu0 %933
    %935 = vrot.lane.b32.xlu0 %v701, 124
    %v936 = vpop.permute.xlu0 %935
    %937 = vrot.lane.b32.xlu0 %v702, 124
    %v938 = vpop.permute.xlu0 %937
    %939 = vrot.lane.b32.xlu0 %v703, 124
    %v940 = vpop.permute.xlu0 %939
    %941 = vrot.lane.b32.xlu0 %v704, 124
    %v942 = vpop.permute.xlu0 %941
    %943 = vrot.lane.b32.xlu0 %v705, 124
    %v944 = vpop.permute.xlu0 %943
    %945 = vrot.lane.b32.xlu0 %v706, 124
    %v946 = vpop.permute.xlu0 %945
    %v963 = vmax.f32 %v899, %v916
    %v964 = vmax.f32 %v900, %v918
    %v965 = vmax.f32 %v901, %v920
    %v966 = vmax.f32 %v902, %v922
    %v967 = vmax.f32 %v903, %v924
    %v968 = vmax.f32 %v904, %v926
    %v969 = vmax.f32 %v905, %v928
    %v970 = vmax.f32 %v906, %v930
    %v971 = vmax.f32 %v907, %v932
    %v972 = vmax.f32 %v908, %v934
    %v973 = vmax.f32 %v909, %v936
    %v974 = vmax.f32 %v910, %v938
    %v975 = vmax.f32 %v911, %v940
    %v976 = vmax.f32 %v912, %v942
    %v977 = vmax.f32 %v913, %v944
    %v978 = vmax.f32 %v914, %v946
    %979 = vrot.lane.b32.xlu0 %v691, 123
    %v980 = vpop.permute.xlu0 %979
    %981 = vrot.lane.b32.xlu0 %v692, 123
    %v982 = vpop.permute.xlu0 %981
    %983 = vrot.lane.b32.xlu0 %v693, 123
    %v984 = vpop.permute.xlu0 %983
    %985 = vrot.lane.b32.xlu0 %v694, 123
    %v986 = vpop.permute.xlu0 %985
    %987 = vrot.lane.b32.xlu0 %v695, 123
    %v988 = vpop.permute.xlu0 %987
    %989 = vrot.lane.b32.xlu0 %v696, 123
    %v990 = vpop.permute.xlu0 %989
    %991 = vrot.lane.b32.xlu0 %v697, 123
    %v992 = vpop.permute.xlu0 %991
    %993 = vrot.lane.b32.xlu0 %v698, 123
    %v994 = vpop.permute.xlu0 %993
    %995 = vrot.lane.b32.xlu0 %v699, 123
    %v996 = vpop.permute.xlu0 %995
    %997 = vrot.lane.b32.xlu0 %v700, 123
    %v998 = vpop.permute.xlu0 %997
    %999 = vrot.lane.b32.xlu0 %v701, 123
    %v1000 = vpop.permute.xlu0 %999
    %1001 = vrot.lane.b32.xlu0 %v702, 123
    %v1002 = vpop.permute.xlu0 %1001
    %1003 = vrot.lane.b32.xlu0 %v703, 123
    %v1004 = vpop.permute.xlu0 %1003
    %1005 = vrot.lane.b32.xlu0 %v704, 123
    %v1006 = vpop.permute.xlu0 %1005
    %1007 = vrot.lane.b32.xlu0 %v705, 123
    %v1008 = vpop.permute.xlu0 %1007
    %1009 = vrot.lane.b32.xlu0 %v706, 123
    %v1010 = vpop.permute.xlu0 %1009
    %v1027 = vmax.f32 %v963, %v980
    %v1028 = vmax.f32 %v964, %v982
    %v1029 = vmax.f32 %v965, %v984
    %v1030 = vmax.f32 %v966, %v986
    %v1031 = vmax.f32 %v967, %v988
    %v1032 = vmax.f32 %v968, %v990
    %v1033 = vmax.f32 %v969, %v992
    %v1034 = vmax.f32 %v970, %v994
    %v1035 = vmax.f32 %v971, %v996
    %v1036 = vmax.f32 %v972, %v998
    %v1037 = vmax.f32 %v973, %v1000
    %v1038 = vmax.f32 %v974, %v1002
    %v1039 = vmax.f32 %v975, %v1004
    %v1040 = vmax.f32 %v976, %v1006
    %v1041 = vmax.f32 %v977, %v1008
    %v1042 = vmax.f32 %v978, %v1010
    %1043 = vrot.lane.b32.xlu0 %v691, 122
    %v1044 = vpop.permute.xlu0 %1043
    %1045 = vrot.lane.b32.xlu0 %v692, 122
    %v1046 = vpop.permute.xlu0 %1045
    %1047 = vrot.lane.b32.xlu0 %v693, 122
    %v1048 = vpop.permute.xlu0 %1047
    %1049 = vrot.lane.b32.xlu0 %v694, 122
    %v1050 = vpop.permute.xlu0 %1049
    %1051 = vrot.lane.b32.xlu0 %v695, 122
    %v1052 = vpop.permute.xlu0 %1051
    %1053 = vrot.lane.b32.xlu0 %v696, 122
    %v1054 = vpop.permute.xlu0 %1053
    %1055 = vrot.lane.b32.xlu0 %v697, 122
    %v1056 = vpop.permute.xlu0 %1055
    %1057 = vrot.lane.b32.xlu0 %v698, 122
    %v1058 = vpop.permute.xlu0 %1057
    %1059 = vrot.lane.b32.xlu0 %v699, 122
    %v1060 = vpop.permute.xlu0 %1059
    %1061 = vrot.lane.b32.xlu0 %v700, 122
    %v1062 = vpop.permute.xlu0 %1061
    %1063 = vrot.lane.b32.xlu0 %v701, 122
    %v1064 = vpop.permute.xlu0 %1063
    %1065 = vrot.lane.b32.xlu0 %v702, 122
    %v1066 = vpop.permute.xlu0 %1065
    %1067 = vrot.lane.b32.xlu0 %v703, 122
    %v1068 = vpop.permute.xlu0 %1067
    %1069 = vrot.lane.b32.xlu0 %v704, 122
    %v1070 = vpop.permute.xlu0 %1069
    %1071 = vrot.lane.b32.xlu0 %v705, 122
    %v1072 = vpop.permute.xlu0 %1071
    %1073 = vrot.lane.b32.xlu0 %v706, 122
    %v1074 = vpop.permute.xlu0 %1073
    %v1091 = vmax.f32 %v1027, %v1044
    %v1092 = vmax.f32 %v1028, %v1046
    %v1093 = vmax.f32 %v1029, %v1048
    %v1094 = vmax.f32 %v1030, %v1050
    %v1095 = vmax.f32 %v1031, %v1052
    %v1096 = vmax.f32 %v1032, %v1054
    %v1097 = vmax.f32 %v1033, %v1056
    %v1098 = vmax.f32 %v1034, %v1058
    %v1099 = vmax.f32 %v1035, %v1060
    %v1100 = vmax.f32 %v1036, %v1062
    %v1101 = vmax.f32 %v1037, %v1064
    %v1102 = vmax.f32 %v1038, %v1066
    %v1103 = vmax.f32 %v1039, %v1068
    %v1104 = vmax.f32 %v1040, %v1070
    %v1105 = vmax.f32 %v1041, %v1072
    %v1106 = vmax.f32 %v1042, %v1074
    %v1107 = vsub.f32 1.0, %v1091
    %v1108 = vsub.f32 1.0, %v1092
    %v1109 = vsub.f32 1.0, %v1093
    %v1110 = vsub.f32 1.0, %v1094
    %v1111 = vsub.f32 1.0, %v1095
    %v1112 = vsub.f32 1.0, %v1096
    %v1113 = vsub.f32 1.0, %v1097
    %v1114 = vsub.f32 1.0, %v1098
    %v1115 = vsub.f32 1.0, %v1099
    %v1116 = vsub.f32 1.0, %v1100
    %v1117 = vsub.f32 1.0, %v1101
    %v1118 = vsub.f32 1.0, %v1102
    %v1119 = vsub.f32 1.0, %v1103
    %v1120 = vsub.f32 1.0, %v1104
    %v1121 = vsub.f32 1.0, %v1105
    %v1122 = vsub.f32 1.0, %v1106
    %v1123 = vld [vmem:[#allocation5] sm:$0xff]
    %v1124 = vld [vmem:[#allocation5 + $0x8] sm:$0xff]
    %v1125 = vld [vmem:[#allocation5 + $0x10] sm:$0xff]
    %v1126 = vld [vmem:[#allocation5 + $0x18] sm:$0xff]
    %v1127 = vld [vmem:[#allocation5 + $0x20] sm:$0xff]
    %v1128 = vld [vmem:[#allocation5 + $0x28] sm:$0xff]
    %v1129 = vld [vmem:[#allocation5 + $0x30] sm:$0xff]
    %v1130 = vld [vmem:[#allocation5 + $0x38] sm:$0xff]
    %v1131 = vld [vmem:[#allocation5 + $0x40] sm:$0xff]
    %v1132 = vld [vmem:[#allocation5 + $0x48] sm:$0xff]
    %v1133 = vld [vmem:[#allocation5 + $0x50] sm:$0xff]
    %v1134 = vld [vmem:[#allocation5 + $0x58] sm:$0xff]
    %v1135 = vld [vmem:[#allocation5 + $0x60] sm:$0xff]
    %v1136 = vld [vmem:[#allocation5 + $0x68] sm:$0xff]
    %v1137 = vld [vmem:[#allocation5 + $0x70] sm:$0xff]
    %v1138 = vld [vmem:[#allocation5 + $0x78] sm:$0xff]
    %v1139 = vmul.f32 %v1123, %v1107
    %v1140 = vmul.f32 %v1124, %v1108
    %v1141 = vmul.f32 %v1125, %v1109
    %v1142 = vmul.f32 %v1126, %v1110
    %v1143 = vmul.f32 %v1127, %v1111
    %v1144 = vmul.f32 %v1128, %v1112
    %v1145 = vmul.f32 %v1129, %v1113
    %v1146 = vmul.f32 %v1130, %v1114
    %v1147 = vmul.f32 %v1131, %v1115
    %v1148 = vmul.f32 %v1132, %v1116
    %v1149 = vmul.f32 %v1133, %v1117
    %v1150 = vmul.f32 %v1134, %v1118
    %v1151 = vmul.f32 %v1135, %v1119
    %v1152 = vmul.f32 %v1136, %v1120
    %v1153 = vmul.f32 %v1137, %v1121
    %v1154 = vmul.f32 %v1138, %v1122
    %vm1155 = vcmask 130048
    %1156 = vst.msk [vmem:[#allocation7] sm:$0xff] %vm1155, %v1139
    %1157 = vst.msk [vmem:[#allocation7 + $0x8] sm:$0xff] %vm1155, %v1140
    %1158 = vst.msk [vmem:[#allocation7 + $0x10] sm:$0xff] %vm1155, %v1141
    %1159 = vst.msk [vmem:[#allocation7 + $0x18] sm:$0xff] %vm1155, %v1142
    %1160 = vst.msk [vmem:[#allocation7 + $0x20] sm:$0xff] %vm1155, %v1143
    %1161 = vst.msk [vmem:[#allocation7 + $0x28] sm:$0xff] %vm1155, %v1144
    %1162 = vst.msk [vmem:[#allocation7 + $0x30] sm:$0xff] %vm1155, %v1145
    %1163 = vst.msk [vmem:[#allocation7 + $0x38] sm:$0xff] %vm1155, %v1146
    %1164 = vst.msk [vmem:[#allocation7 + $0x40] sm:$0xff] %vm1155, %v1147
    %1165 = vst.msk [vmem:[#allocation7 + $0x48] sm:$0xff] %vm1155, %v1148
    %1166 = vst.msk [vmem:[#allocation7 + $0x50] sm:$0xff] %vm1155, %v1149
    %1167 = vst.msk [vmem:[#allocation7 + $0x58] sm:$0xff] %vm1155, %v1150
    %1168 = vst.msk [vmem:[#allocation7 + $0x60] sm:$0xff] %vm1155, %v1151
    %1169 = vst.msk [vmem:[#allocation7 + $0x68] sm:$0xff] %vm1155, %v1152
    %1170 = vst.msk [vmem:[#allocation7 + $0x70] sm:$0xff] %vm1155, %v1153
    %1171 = vst.msk [vmem:[#allocation7 + $0x78] sm:$0xff] %vm1155, %v1154
    %v1172 = vsel %vm1155, %v1107, 0.0
    %v1173 = vsel %vm1155, %v1108, 0.0
    %v1174 = vadd.f32 %v1172, %v1173
    %v1175 = vsel %vm1155, %v1109, 0.0
    %v1176 = vadd.f32 %v1174, %v1175
    %v1177 = vsel %vm1155, %v1110, 0.0
    %v1178 = vadd.f32 %v1176, %v1177
    %v1179 = vsel %vm1155, %v1111, 0.0
    %v1180 = vadd.f32 %v1178, %v1179
    %v1181 = vsel %vm1155, %v1112, 0.0
    %v1182 = vadd.f32 %v1180, %v1181
    %v1183 = vsel %vm1155, %v1113, 0.0
    %v1184 = vadd.f32 %v1182, %v1183
    %v1185 = vsel %vm1155, %v1114, 0.0
    %v1186 = vadd.f32 %v1184, %v1185
    %v1187 = vsel %vm1155, %v1115, 0.0
    %v1188 = vadd.f32 %v1186, %v1187
    %v1189 = vsel %vm1155, %v1116, 0.0
    %v1190 = vadd.f32 %v1188, %v1189
    %v1191 = vsel %vm1155, %v1117, 0.0
    %v1192 = vadd.f32 %v1190, %v1191
    %v1193 = vsel %vm1155, %v1118, 0.0
    %v1194 = vadd.f32 %v1192, %v1193
    %v1195 = vsel %vm1155, %v1119, 0.0
    %v1196 = vadd.f32 %v1194, %v1195
    %v1197 = vsel %vm1155, %v1120, 0.0
    %v1198 = vadd.f32 %v1196, %v1197
    %v1199 = vsel %vm1155, %v1121, 0.0
    %v1200 = vadd.f32 %v1198, %v1199
    %v1201 = vsel %vm1155, %v1122, 0.0
    %v1202 = vadd.f32 %v1200, %v1201
    %1203 = vadd.xlane.f32.xlu0 %v1202
    %v1204 = vpop.xlane.xlu0 %1203
    %v1205 = vrot.slane %v1204, 4
    %v1206 = vadd.f32 %v1204, %v1205
    %v1207 = vrot.slane %v1206, 2
    %v1208 = vadd.f32 %v1206, %v1207
    %v1209 = vrot.slane %v1208, 1
    %v1210 = vadd.f32 %v1208, %v1209
    %s1211 = vtos %v1210
    %v1212 = vstv %s1211
    %1213 = vst [vmem:[#allocation8] sm:$0x1] %v1212
    // Predicated region
    $region18: #{tpu_custom_call.1} parent=1 // pred_check
      _
    $region19: #{tpu_custom_call.1} parent=1 // pred_check_branch
      %1215 = sbr.rel (0) target = $region21
    $region20: #{tpu_custom_call.1} parent=1 // pred_region
      %s1217 = ssub.s32 2048, 2048
      %1218 = vsyncadd [#allocation4], %s1217
      %s1219 = sshll.u32 [#allocation7], 4
      %s1220 = int_to_ptr.vmem [resolvable:$true] %s1219
      %1225 = dma.vmem_to_hbm [thread:$0]  %s1220, 2048, %s2, [#allocation4], 128, 128, 8
    $region21: #{tpu_custom_call.1} parent=1 // pred_fallthru
      _
    // Predicated region
    $region22: #{tpu_custom_call.1} parent=1 // pred_check
      _
    $region23: #{tpu_custom_call.1} parent=1 // pred_check_branch
      %1227 = sbr.rel (0) target = $region25
    $region24: #{tpu_custom_call.1} parent=1 // pred_region
      %s1229 = ssub.s32 16, 16
      %1230 = vsyncadd [#allocation9], %s1229
      %s1232 = sshll.u32 [#allocation8], 4
      %s1233 = int_to_ptr.vmem [resolvable:$true] %s1232
      %1235 = dma.vmem_to_hbm [thread:$0]  %s1233, 16, %s3, [#allocation9]
    $region25: #{tpu_custom_call.1} parent=1 // pred_fallthru
      _
    // Predicated region
    $region26: #{tpu_custom_call.1} parent=1 // pred_check
      _
    $region27: #{tpu_custom_call.1} parent=1 // pred_check_branch
      %1237 = sbr.rel (0) target = $region29
    $region28: #{tpu_custom_call.1} parent=1 // pred_region
      %1238 = dma.done [#allocation4], 2048
    $region29: #{tpu_custom_call.1} parent=1 // pred_fallthru
      _
    // Predicated region
    $region30: #{tpu_custom_call.1} parent=1 // pred_check
      _
    $region31: #{tpu_custom_call.1} parent=1 // pred_check_branch
      %1240 = sbr.rel (0) target = $region33
    $region32: #{tpu_custom_call.1} parent=1 // pred_region
      %1241 = dma.done [#allocation9], 16
    $region33: #{tpu_custom_call.1} parent=1 // pred_fallthru
      _
    %1242 = vsyncpa [#allocation3], 1
    %1243 = vsyncpa [#allocation6], 1
    %1244 = vsyncpa [#allocation4], 1
    %1245 = vsyncpa [#allocation9], 1

</llo_original>
